<compile_context>
chip_gen: v7x
topology: tpu7x:2x2x1
jax: 0.10.0
libtpu: 0.0.40
codegen_flags: <defaults>
</compile_context>

<pallas_src>
import functools

import jax
import jax.numpy as jnp
from jax.experimental import pallas as pl
from jax.experimental.pallas import tpu as pltpu


def _round_up(x, m):
    return (x + m - 1) // m * m


def _sublane_tile(itemsize):
    # f32 -> 8 rows, bf16 -> 16, int8/fp8 -> 32 per VMEM tile.
    return max(8 * (4 // itemsize), 8)


def _vmem_budgets():
    """(vmem_limit_bytes, per_block_tile_budget_bytes), generation aware."""
    vmem_phys = None
    try:
        vmem_phys = getattr(pltpu.get_tpu_info(), "vmem_capacity_bytes", None)
    except Exception:
        vmem_phys = None
    if vmem_phys is None:
        vmem_phys = 64 * 1024 * 1024  # assume the tightest (v7x-class) per-TC VMEM
    if vmem_phys >= 128 * 1024 * 1024:            # v5e / v6e
        return 96 * 1024 * 1024, 20 * 1024 * 1024
    return 40 * 1024 * 1024, 9 * 1024 * 1024       # v7x / unknown


def _conv3_sigmoid(pooled, w_ref, pad_ref):
    """Conv1d(1,1,3,pad=1) over channels + sigmoid on an (n, C, 1) f32 column.

    y[c] = w0*p[c-1] + w1*p[c] + w2*p[c+1]   (zero padded at both channel ends)

    pad_ref is an (n, C+2, 1) f32 VMEM scratch used as a zero-padded window so
    the neighbour taps are plain sublane-offset ref loads (no roll / value-
    slice layout tricks needed).  Cost is O(C) and negligible vs HBM traffic.
    """
    C = pooled.shape[1]
    pad_ref[...] = jnp.zeros_like(pad_ref)
    pad_ref[:, pl.ds(1, C), :] = pooled
    y = (w_ref[0] * pad_ref[:, pl.ds(0, C), :]
         + w_ref[1] * pooled
         + w_ref[2] * pad_ref[:, pl.ds(2, C), :])
    # Exact sigmoid: the gate is only (n, C, 1), so this costs nothing.
    return 1.0 / (1.0 + jnp.exp(-y))


def _fused_kernel(w_ref, x_ref, o_ref, pad_ref, *, inv_hw):
    # w_ref: (3,) f32 SMEM.  x_ref/o_ref: (bb, C, HW).  pad_ref: (bb, C+2, 1) f32.
    x = x_ref[...]
    # Global average pool over spatial positions (lane-axis reduction), f32 acc.
    pooled = jnp.sum(x, axis=2, keepdims=True, dtype=jnp.float32) * inv_hw
    gate = _conv3_sigmoid(pooled, w_ref, pad_ref)                  # (bb, C, 1) f32
    o_ref[...] = (x * gate.astype(x.dtype)).astype(o_ref.dtype)   # lane broadcast


def _pool_kernel(x_ref, p_ref, *, inv_hw, hw, hw_t, needs_mask):
    # x_ref: (1, C, hw_t).  p_ref: (1, C, 1) f32 output block; its block index
    # is constant across t, so it stays VMEM-resident and acts as accumulator.
    t = pl.program_id(1)

    @pl.when(t == 0)
    def _():
        p_ref[...] = jnp.zeros_like(p_ref)

    xf = x_ref[...].astype(jnp.float32)
    if needs_mask:
        col = jax.lax.broadcasted_iota(jnp.int32, xf.shape, 2) + t * hw_t
        xf = jnp.where(col < hw, xf, 0.0)
    p_ref[...] += jnp.sum(xf, axis=2, keepdims=True)

    @pl.when(t == pl.num_programs(1) - 1)
    def _():
        p_ref[...] *= inv_hw


def _gate_mul_kernel(w_ref, p_ref, x_ref, o_ref, pad_ref):
    # Gate recomputed every grid step (a handful of VPU/EUP ops on a (1,C,1)
    # column) so there is no cross-step dependency and both grid axes can be
    # 'parallel' -- lets both TensorCores on v7x split (B, n_hw) even for B=1.
    gate = _conv3_sigmoid(p_ref[...], w_ref, pad_ref)              # (1, C, 1) f32
    x = x_ref[...]
    o_ref[...] = (x * gate.astype(x.dtype)).astype(o_ref.dtype)


def attention_cha(x, conv1_w, *, tile_budget_bytes=None, vmem_limit_bytes=None,
                  donate_x=False):
    """x: (B, C, H, W) NCHW.  conv1_w: Conv1d(1, 1, 3, bias=False) weight (3 elems)."""
    B, C, H, W = x.shape
    HW = H * W
    xr = x.reshape(B, C, HW)                 # free reshape: HW stays on the lane axis
    w = jnp.asarray(conv1_w, dtype=jnp.float32).reshape(3)
    itemsize = x.dtype.itemsize

    default_vmem, default_budget = _vmem_budgets()
    vmem_limit = vmem_limit_bytes or default_vmem
    budget = tile_budget_bytes or default_budget

    def _cparams(dims):
        return pltpu.CompilerParams(dimension_semantics=dims,
                                    vmem_limit_bytes=vmem_limit)

    # VMEM footprint accounting *including* sublane/lane padding.
    # TODO(synk): when C < sublane tile (e.g. C=4 f32/bf16), fold spatial rows
    # into the sublane axis to fill vregs instead of paying the padding tax.
    sub = _sublane_tile(itemsize)
    c_pad = _round_up(C, sub)
    per_batch_bytes = c_pad * _round_up(HW, 128) * itemsize

    if per_batch_bytes <= budget:
        # --- Fully fused single pass: pool + conv + sigmoid + gate multiply.
        # Fold as many batch elements per grid step as the budget allows so
        # small images still produce large, lane-dense DMAs.
        bb_cap = max(1, budget // per_batch_bytes)
        bb = 1
        for d in range(min(B, bb_cap), 0, -1):
            if B % d == 0:
                bb = d
                break
        out = pl.pallas_call(
            functools.partial(_fused_kernel, inv_hw=1.0 / HW),
            out_shape=jax.ShapeDtypeStruct((B, C, HW), x.dtype),
            grid=(B // bb,),
            in_specs=[
                pl.BlockSpec(memory_space=pltpu.MemorySpace.SMEM),   # conv1 weights
                pl.BlockSpec((bb, C, HW), lambda i: (i, 0, 0)),      # batch block
            ],
            out_specs=pl.BlockSpec((bb, C, HW), lambda i: (i, 0, 0)),
            scratch_shapes=[pltpu.VMEM((bb, C + 2, 1), jnp.float32)],
            compiler_params=_cparams(("parallel",)),
            input_output_aliases=({1: 0} if donate_x else {}),
        )(w, xr)
    else:
        # --- HW-tiled two-pass path (x read twice); only used when one (C, HW)
        # block does not fit the per-generation VMEM budget.
        max_cols = max(budget // (c_pad * itemsize), 128)
        hw_t = max((max_cols // 128) * 128, 128)
        hw_t = min(hw_t, _round_up(HW, 128))
        n_hw = pl.cdiv(HW, hw_t)
        needs_mask = (HW % hw_t) != 0

        # Pass 1: global average pool, accumulated directly into the resident
        # (1, C, 1) output block over the HW tiles.
        pooled = pl.pallas_call(
            functools.partial(_pool_kernel, inv_hw=1.0 / HW, hw=HW, hw_t=hw_t,
                              needs_mask=needs_mask),
            out_shape=jax.ShapeDtypeStruct((B, C, 1), jnp.float32),
            grid=(B, n_hw),
            in_specs=[pl.BlockSpec((1, C, hw_t), lambda b, t: (b, 0, t))],
            out_specs=pl.BlockSpec((1, C, 1), lambda b, t: (b, 0, 0)),
            compiler_params=_cparams(("parallel", "arbitrary")),
        )(xr)

        # Pass 2: channel conv + sigmoid gate (recomputed per step) and the
        # broadcast gate multiply over HW tiles; fully parallel grid.
        out = pl.pallas_call(
            _gate_mul_kernel,
            out_shape=jax.ShapeDtypeStruct((B, C, HW), x.dtype),
            grid=(B, n_hw),
            in_specs=[
                pl.BlockSpec(memory_space=pltpu.MemorySpace.SMEM),    # conv1 weights
                pl.BlockSpec((1, C, 1), lambda b, t: (b, 0, 0)),      # pooled column
                pl.BlockSpec((1, C, hw_t), lambda b, t: (b, 0, t)),
            ],
            out_specs=pl.BlockSpec((1, C, hw_t), lambda b, t: (b, 0, t)),
            scratch_shapes=[pltpu.VMEM((1, C + 2, 1), jnp.float32)],
            compiler_params=_cparams(("parallel", "parallel")),
            input_output_aliases=({2: 0} if donate_x else {}),
        )(w, pooled, xr)

    return out.reshape(B, C, H, W)


def _reference(x, conv1_w):
    """Pure-JAX reference matching the PyTorch forward."""
    pooled = jnp.mean(x, axis=(2, 3))                                # (B, C)
    padded = jnp.pad(pooled, ((0, 0), (1, 1)))
    y = (conv1_w[0] * padded[:, :-2]
         + conv1_w[1] * padded[:, 1:-1]
         + conv1_w[2] * padded[:, 2:])                               # (B, C)
    return x * jax.nn.sigmoid(y)[:, :, None, None]


if __name__ == "__main__":
    key = jax.random.PRNGKey(0)
    kx, kw = jax.random.split(key)

    B, C, H, W = 2, 4, 16, 16
    x = jax.random.normal(kx, (B, C, H, W), dtype=jnp.float32)
    # Conv1d(1, 1, kernel_size=3, bias=False) weight of shape (1, 1, 3), flattened.
    conv1_w = (jax.random.normal(kw, (3,), dtype=jnp.float32) * 0.5).astype(jnp.float32)

    ref = _reference(x, conv1_w)

    # Path 1: fused single-pass kernel (multi-batch block per grid step).
    out_fused = attention_cha(x, conv1_w)
    jax.block_until_ready(out_fused)
    assert out_fused.shape == (B, C, H, W)
    assert jnp.allclose(out_fused, ref, atol=1e-5, rtol=1e-5), "fused path mismatch"

    # Path 2: force the HW-tiled two-kernel path (v7x-style tight budget).
    out_tiled = attention_cha(x, conv1_w, tile_budget_bytes=2048)
    jax.block_until_ready(out_tiled)
    assert jnp.allclose(out_tiled, ref, atol=1e-5, rtol=1e-5), "tiled path mismatch"

    # Path 3: tiled path with a non-dividing HW (exercise cdiv grid + masking).
    x2 = jax.random.normal(kx, (2, 4, 12, 12), dtype=jnp.float32)    # HW = 144
    ref2 = _reference(x2, conv1_w)
    out2 = attention_cha(x2, conv1_w, tile_budget_bytes=2048)
    jax.block_until_ready(out2)
    assert jnp.allclose(out2, ref2, atol=1e-5, rtol=1e-5), "masked tiled path mismatch"

    print("KERNEL_OK")
</pallas_src>

<mosaic_0001>
module attributes {stable_mosaic.version = 11 : i64} {
  func.func @_fused_kernel(%arg0: i32, %arg1: memref<3xf32, #tpu.memory_space<smem>>, %arg2: memref<2x4x256xf32, #tpu.memory_space<vmem>>, %arg3: memref<2x4x256xf32, #tpu.memory_space<vmem>>, %arg4: memref<2x6x1xf32, #tpu.memory_space<vmem>>) attributes {dimension_semantics = [#tpu.dimension_semantics<parallel>], iteration_bounds = array<i64: 1>, scalar_prefetch = 0 : i64, scratch_operands = 1 : i64, tpu.core_type = #tpu.core_type<tc>, window_params = [{transform_indices = @transform_0, window_bounds = array<i64: 3>}, {transform_indices = @transform_1, window_bounds = array<i64: 2, 4, 256>}, {transform_indices = @transform_2, window_bounds = array<i64: 2, 4, 256>}]} {
    %c0 = arith.constant 0 : index
    %c0_0 = arith.constant 0 : index
    %c0_1 = arith.constant 0 : index
    %0 = vector.load %arg2[%c0, %c0_0, %c0_1] : memref<2x4x256xf32, #tpu.memory_space<vmem>>, vector<2x4x256xf32>
    %cst = arith.constant dense<0.000000e+00> : vector<2x4xf32>
    %1 = vector.multi_reduction <add>, %0, %cst [2] : vector<2x4x256xf32> to vector<2x4xf32>
    %2 = vector.shape_cast %1 : vector<2x4xf32> to vector<2x4x1xf32>
    %cst_2 = arith.constant 3.906250e-03 : f32
    %3 = vector.broadcast %cst_2 : f32 to vector<2x4x1xf32>
    %4 = arith.mulf %2, %3 : vector<2x4x1xf32>
    %cst_3 = arith.constant 0.000000e+00 : f32
    %5 = vector.broadcast %cst_3 : f32 to vector<2x6x1xf32>
    %c0_4 = arith.constant 0 : index
    %c0_5 = arith.constant 0 : index
    %c0_6 = arith.constant 0 : index
    %6 = vector.load %arg4[%c0_4, %c0_5, %c0_6] : memref<2x6x1xf32, #tpu.memory_space<vmem>>, vector<2x6x1xf32>
    tpu.vector_store %arg4[%c0_4, %c0_5, %c0_6], %5 {strides = array<i32>} : memref<2x6x1xf32, #tpu.memory_space<vmem>>, vector<2x6x1xf32>,
    %c0_7 = arith.constant 0 : index
    %c1 = arith.constant 1 : index
    %c0_8 = arith.constant 0 : index
    %7 = vector.load %arg4[%c0_7, %c1, %c0_8] : memref<2x6x1xf32, #tpu.memory_space<vmem>>, vector<2x4x1xf32>
    tpu.vector_store %arg4[%c0_7, %c1, %c0_8], %4 {strides = array<i32>} : memref<2x6x1xf32, #tpu.memory_space<vmem>>, vector<2x4x1xf32>,
    %c0_9 = arith.constant 0 : index
    %8 = memref.load %arg1[%c0_9] : memref<3xf32, #tpu.memory_space<smem>>
    %c0_10 = arith.constant 0 : index
    %c0_11 = arith.constant 0 : index
    %c0_12 = arith.constant 0 : index
    %9 = vector.load %arg4[%c0_10, %c0_11, %c0_12] : memref<2x6x1xf32, #tpu.memory_space<vmem>>, vector<2x4x1xf32>
    %10 = vector.broadcast %8 : f32 to vector<2x4x1xf32>
    %11 = arith.mulf %10, %9 : vector<2x4x1xf32>
    %c1_13 = arith.constant 1 : index
    %12 = memref.load %arg1[%c1_13] : memref<3xf32, #tpu.memory_space<smem>>
    %13 = vector.broadcast %12 : f32 to vector<2x4x1xf32>
    %14 = arith.mulf %13, %4 : vector<2x4x1xf32>
    %15 = arith.addf %11, %14 : vector<2x4x1xf32>
    %c2 = arith.constant 2 : index
    %16 = memref.load %arg1[%c2] : memref<3xf32, #tpu.memory_space<smem>>
    %c0_14 = arith.constant 0 : index
    %c2_15 = arith.constant 2 : index
    %c0_16 = arith.constant 0 : index
    %17 = vector.load %arg4[%c0_14, %c2_15, %c0_16] : memref<2x6x1xf32, #tpu.memory_space<vmem>>, vector<2x4x1xf32>
    %18 = vector.broadcast %16 : f32 to vector<2x4x1xf32>
    %19 = arith.mulf %18, %17 : vector<2x4x1xf32>
    %20 = arith.addf %15, %19 : vector<2x4x1xf32>
    %cst_17 = arith.constant 0.000000e+00 : f32
    %21 = vector.broadcast %cst_17 : f32 to vector<2x4x1xf32>
    %22 = arith.subf %21, %20 : vector<2x4x1xf32>
    %23 = math.exp %22 : vector<2x4x1xf32>
    %cst_18 = arith.constant 1.000000e+00 : f32
    %24 = vector.broadcast %cst_18 : f32 to vector<2x4x1xf32>
    %25 = arith.addf %24, %23 : vector<2x4x1xf32>
    %cst_19 = arith.constant 1.000000e+00 : f32
    %26 = vector.broadcast %cst_19 : f32 to vector<2x4x1xf32>
    %27 = arith.divf %26, %25 : vector<2x4x1xf32>
    %28 = vector.broadcast %27 : vector<2x4x1xf32> to vector<2x4x256xf32>
    %29 = arith.mulf %0, %28 : vector<2x4x256xf32>
    %c0_20 = arith.constant 0 : index
    %c0_21 = arith.constant 0 : index
    %c0_22 = arith.constant 0 : index
    %30 = vector.load %arg3[%c0_20, %c0_21, %c0_22] : memref<2x4x256xf32, #tpu.memory_space<vmem>>, vector<2x4x256xf32>
    tpu.vector_store %arg3[%c0_20, %c0_21, %c0_22], %29 {strides = array<i32>} : memref<2x4x256xf32, #tpu.memory_space<vmem>>, vector<2x4x256xf32>,
    return
  }
  func.func @transform_0(%arg0: i32) -> i32 {
    %c0_i32 = arith.constant 0 : i32
    %c0_i32_0 = arith.constant 0 : i32
    return %c0_i32 : i32
  }
  func.func @transform_1(%arg0: i32) -> (i32, i32, i32) {
    %c0_i32 = arith.constant 0 : i32
    %c0_i32_0 = arith.constant 0 : i32
    %c0_i32_1 = arith.constant 0 : i32
    return %arg0, %c0_i32, %c0_i32_0 : i32, i32, i32
  }
  func.func @transform_2(%arg0: i32) -> (i32, i32, i32) {
    %c0_i32 = arith.constant 0 : i32
    %c0_i32_0 = arith.constant 0 : i32
    %c0_i32_1 = arith.constant 0 : i32
    return %arg0, %c0_i32, %c0_i32_0 : i32, i32, i32
  }
}

</mosaic_0001>

<llo_original>
// kernel: tpu_custom_call.1
$region0: #{tpu_custom_call.1}
  #allocation0 [shape = 'u32[]', space=smem, size = 0x4, offset = 0x4, fixed_abs, tag = 'smem constant byte address 0x4 - core index']
  #allocation1 [shape = 'u32[144,128]{1,0:T(1,128)}', space=vmem, size = 0x12000, scoped, tag = 'internal scratch']
  #allocation2 [shape = 'f32[2,6,1]{2,1,0:T(8,128)}', space=vmem, size = 0x2000, scoped, tag = 'scratch operand']
  %s0 = inlined_call_operand.hbm [shape: f32[3], index: 0, kind: input, shape index: {}]
  %s1 = inlined_call_operand.hbm [shape: f32[2,4,256], index: 1, kind: input, shape index: {}]
  %s2 = inlined_call_operand.hbm [shape: f32[2,4,256], index: 2, kind: output, shape index: {}]
  %s3 = sld [smem:[#allocation0]]
  $region26: #{tpu_custom_call.1} parent=0
    _
  %s5 = ssub.s32 1, %s3
  %s6 = scalar_select 0, %s5, %s3
  $region1: #{tpu_custom_call.1} parent=0
    #allocation3 [shape = 'u8[512]{0}', space=smem, size = 0x200, scoped, tag = 'input window, operand 0, single buffered']
    #allocation4 [shape = 's32[1]{0}', space=sflag, size = 0x4, scoped, tag = 'scoped memory for tpu_custom_call.1']
    #allocation5 [shape = 's32[1]{0}', space=sflag, size = 0x4, scoped, tag = 'scoped memory for tpu_custom_call.1']
    #allocation6 [shape = 's32[1]{0}', space=sflag, size = 0x4, scoped, tag = 'scoped memory for tpu_custom_call.1']
    #allocation7 [shape = 'u8[8192]{0}', space=vmem, size = 0x2000, scoped, tag = 'input window, operand 1, single buffered']
    #allocation8 [shape = 'u8[8192]{0}', space=vmem, size = 0x2000, scoped, tag = 'output window, operand 0, single buffered']
    %7 = vsyncpa [#allocation6], 0
    %8 = vsyncpa [#allocation4], 0
    %9 = vsyncpa [#allocation5], 0
    // Predicated region
    $region2: #{tpu_custom_call.1} parent=1 // pred_check
      _
    $region3: #{tpu_custom_call.1} parent=1 // pred_check_branch
      %11 = sbr.rel (0) target = $region5
    $region4: #{tpu_custom_call.1} parent=1 // pred_region
      %s13 = ssub.s32 16, 16
      %14 = vsyncadd [#allocation6], %s13
      %17 = dma.hbm_to_smem %s0, 16, [#allocation3], [#allocation6]
    $region5: #{tpu_custom_call.1} parent=1 // pred_fallthru
      _
    // Predicated region
    $region6: #{tpu_custom_call.1} parent=1 // pred_check
      _
    $region7: #{tpu_custom_call.1} parent=1 // pred_check_branch
      %19 = sbr.rel (0) target = $region9
    $region8: #{tpu_custom_call.1} parent=1 // pred_region
      %s21 = ssub.s32 256, 256
      %22 = vsyncadd [#allocation4], %s21
      %s23 = sshll.u32 [#allocation7], 4
      %s24 = int_to_ptr.vmem [resolvable:$true] %s23
      %29 = dma.hbm_to_vmem [thread:$0]  %s1, 256, %s24, [#allocation4], 128, 128, 8
    $region9: #{tpu_custom_call.1} parent=1 // pred_fallthru
      _
    // Predicated region
    $region10: #{tpu_custom_call.1} parent=1 // pred_check
      _
    $region11: #{tpu_custom_call.1} parent=1 // pred_check_branch
      %31 = sbr.rel (0) target = $region13
    $region12: #{tpu_custom_call.1} parent=1 // pred_region
      %32 = dma.done [#allocation6], 16
    $region13: #{tpu_custom_call.1} parent=1 // pred_fallthru
      _
    // Predicated region
    $region14: #{tpu_custom_call.1} parent=1 // pred_check
      _
    $region15: #{tpu_custom_call.1} parent=1 // pred_check_branch
      %34 = sbr.rel (0) target = $region17
    $region16: #{tpu_custom_call.1} parent=1 // pred_region
      %35 = dma.done [#allocation4], 256
    $region17: #{tpu_custom_call.1} parent=1 // pred_fallthru
      _
    %36 = sfence
    %v37 = vld [vmem:[#allocation7] sm:$0xff]
    %v38 = vld [vmem:[#allocation7 + $0x8] sm:$0xff]
    %v41 = vcombine.high %v37, %v37
    %v42 = vcombine.high %v38, %v38
    %vm45 = vcmask 1043456
    %v46 = vsel %vm45, %v37, 0.0
    %v47 = vsel %vm45, %v41, 0.0
    %v48 = vadd.f32 %v46, %v47
    %49 = vadd.xlane.f32.xlu0 %v48
    %v50 = vpop.xlane.xlu0 %49
    %v51 = vsel %vm45, %v38, 0.0
    %v52 = vsel %vm45, %v42, 0.0
    %v53 = vadd.f32 %v51, %v52
    %54 = vadd.xlane.f32.xlu0 %v53
    %v55 = vpop.xlane.xlu0 %54
    %v56 = vmul.f32 %v50, 0.00390625
    %v57 = vmul.f32 %v55, 0.00390625
    %vm58 = vcmask 5120
    %59 = vst.msk [vmem:[#allocation2] sm:$0x3f] %vm58, 0.0
    %60 = vst.msk [vmem:[#allocation2 + $0x8] sm:$0x3f] %vm58, 0.0
    %vm61 = vcmask 3072
    %62 = vst.msk [vmem:[#allocation2 + $0x1] sm:$0xf] %vm61, %v56
    %63 = vst.msk [vmem:[#allocation2 + $0x9] sm:$0xf] %vm61, %v57
    %s64 = sld [smem:[#allocation3]]
    %v65 = vld [vmem:[#allocation2] sm:$0xf]
    %v66 = vld [vmem:[#allocation2 + $0x8] sm:$0xf]
    %v67 = vstv %s64
    %v68 = vmul.f32 %v67, %v65
    %v69 = vmul.f32 %v67, %v66
    %s70 = sld [smem:[#allocation3 + $0x1]]
    %v71 = vstv %s70
    %v72 = vmul.f32 %v71, %v56
    %v73 = vmul.f32 %v71, %v57
    %v74 = vadd.f32 %v68, %v72
    %v75 = vadd.f32 %v69, %v73
    %s76 = sld [smem:[#allocation3 + $0x2]]
    %v77 = vld [vmem:[#allocation2 + $0x2] sm:$0xf]
    %v78 = vld [vmem:[#allocation2 + $0xa] sm:$0xf]
    %v79 = vstv %s76
    %v80 = vmul.f32 %v79, %v77
    %v81 = vmul.f32 %v79, %v78
    %v82 = vadd.f32 %v74, %v80
    %v83 = vadd.f32 %v75, %v81
    %v84 = vsub.f32 0.0, %v82
    %v85 = vsub.f32 0.0, %v83
    %v86 = vmul.f32 %v84, 1.442695
    %v87 = vpow.pop %v86
    %v88 = vmul.f32 %v85, 1.442695
    %v89 = vpow.pop %v88
    %v90 = vadd.f32 %v87, 1.0
    %v91 = vadd.f32 %v89, 1.0
    %v92 = vrcp.pop %v90
    %v93 = vmul.f32 1.0, %v92
    %v94 = vrcp.pop %v91
    %v95 = vmul.f32 1.0, %v94
    %97 = vset.pattern.permute.xlu0 0
    %98 = vperm.xlu0 %97, %v93
    %v99 = vpop.permute.xlu0 %98
    %101 = vset.pattern.permute.xlu0 0
    %102 = vperm.xlu0 %101, %v95
    %v103 = vpop.permute.xlu0 %102
    %v105 = vunpack.c.l.s4 839922192
    %v106 = vunpack.c.0.s8 %v105
    %v107 = vlaneseq
    %v108 = vshrl.u32 %v107, 7
    %v109 = vsub.s32 %v106, %v108
    %v110 = vrot.slane %v99, %v109
    %v112 = vunpack.c.l.s4 839922192
    %v113 = vunpack.c.0.s8 %v112
    %v114 = vlaneseq
    %v115 = vshrl.u32 %v114, 7
    %v116 = vsub.s32 %v113, %v115
    %v117 = vrot.slane %v103, %v116
    %v120 = vmul.f32 %v37, %v110
    %v121 = vmul.f32 %v38, %v117
    %122 = vst [vmem:[#allocation8] sm:$0xff] %v120
    %123 = vst [vmem:[#allocation8 + $0x8] sm:$0xff] %v121
    // Predicated region
    $region18: #{tpu_custom_call.1} parent=1 // pred_check
      _
    $region19: #{tpu_custom_call.1} parent=1 // pred_check_branch
      %125 = sbr.rel (0) target = $region21
    $region20: #{tpu_custom_call.1} parent=1 // pred_region
      %s127 = ssub.s32 256, 256
      %128 = vsyncadd [#allocation5], %s127
      %s129 = sshll.u32 [#allocation8], 4
      %s130 = int_to_ptr.vmem [resolvable:$true] %s129
      %135 = dma.vmem_to_hbm [thread:$0]  %s130, 256, %s2, [#allocation5], 128, 128, 8
    $region21: #{tpu_custom_call.1} parent=1 // pred_fallthru
      _
    // Predicated region
    $region22: #{tpu_custom_call.1} parent=1 // pred_check
      _
    $region23: #{tpu_custom_call.1} parent=1 // pred_check_branch
      %137 = sbr.rel (0) target = $region25
    $region24: #{tpu_custom_call.1} parent=1 // pred_region
      %138 = dma.done [#allocation5], 256
    $region25: #{tpu_custom_call.1} parent=1 // pred_fallthru
      _
    %139 = vsyncpa [#allocation4], 1
    %140 = vsyncpa [#allocation5], 1
    %141 = vsyncpa [#allocation6], 1

</llo_original>
